<compile_context>
chip_gen: v5e
topology: v5e:2x2
jax: 0.10.0
libtpu: 0.0.40
codegen_flags: <defaults>
</compile_context>

<pallas_src>
import functools

import jax
import jax.numpy as jnp
from jax.experimental import pallas as pl
from jax.experimental.pallas import tpu as pltpu

LANES = 128
SUBLANES = 8
MAX_TILE_BYTES = 4 * 1024 * 1024     # per input, per pipeline buffer
NUM_CHUNKS = 2                       # leading "parallel" axis (2 TCs on v7x)
VMEM_LIMIT_BYTES = 32 * 1024 * 1024  # explicit: 2 in x 2 buf x 4 MiB + slack


def _dice_partial_kernel(pred_ref, true_ref, out_ref, *,
                         steps_per_chunk, tile_rows, rows,
                         num_steps_real, needs_edge_mask):
    c = pl.program_id(0)   # chunk (parallel: one per TensorCore on v7x)
    s = pl.program_id(1)   # step within chunk (arbitrary / accumulating)

    @pl.when(s == 0)
    def _init():
        out_ref[...] = jnp.zeros_like(out_ref)

    p = jax.nn.sigmoid(pred_ref[...].astype(jnp.float32))
    t = true_ref[...].astype(jnp.float32)

    folds = tile_rows // SUBLANES

    def accumulate(pp, tt):
        # Fold the tile into the resident (8, 128) partials — pure VPU adds;
        # intersection and (sum_pred + sum_true) are fused.
        out_ref[0, 0, :, :] += (pp * tt).reshape(folds, SUBLANES, LANES).sum(axis=0)
        out_ref[0, 1, :, :] += (pp + tt).reshape(folds, SUBLANES, LANES).sum(axis=0)

    if not needs_edge_mask:
        accumulate(p, t)
    else:
        # Only the globally-last (and possibly one dummy) block is ragged;
        # every other step takes the unmasked fast path at runtime.
        g = c * steps_per_chunk + s
        is_edge = g >= num_steps_real - 1

        @pl.when(jnp.logical_not(is_edge))
        def _full():
            accumulate(p, t)

        @pl.when(is_edge)
        def _edge():
            # Row-only mask: one iota + one compare (no flat 32-bit index).
            rid = jax.lax.broadcasted_iota(jnp.int32, (tile_rows, LANES), 0)
            valid = rid < (rows - g * tile_rows)
            zero = jnp.float32(0.0)
            accumulate(jnp.where(valid, p, zero), jnp.where(valid, t, zero))


def dice_loss(y_pred, y_true, smooth=1.0):
    """Pallas TPU implementation of DiceLoss.forward (scalar output)."""
    assert y_pred.shape == y_true.shape
    n = y_pred.size
    pred_flat = jnp.ravel(y_pred)
    true_flat = jnp.ravel(y_true)

    rows = n // LANES
    rem = n - rows * LANES

    if rows < SUBLANES:
        # Degenerate tiny input: a kernel would be pure overhead.
        p = jax.nn.sigmoid(pred_flat.astype(jnp.float32))
        t = true_flat.astype(jnp.float32)
        inter = jnp.sum(p * t)
        total = jnp.sum(p) + jnp.sum(t)
        return 1.0 - (2.0 * inter + smooth) / (total + smooth)

    itemsize = max(jnp.dtype(y_pred.dtype).itemsize,
                   jnp.dtype(y_true.dtype).itemsize)
    pack = max(4 // itemsize, 1)
    sub_mult = SUBLANES * pack       # row multiple for native sublane tiling

    n_main = rows * LANES
    if rem == 0:
        pred2d = pred_flat.reshape(rows, LANES)   # zero-copy reshape
        true2d = true_flat.reshape(rows, LANES)
    else:
        # Lane-ragged tail (< 128 elems) goes to the epilogue; the main part
        # is the aligned prefix (no full-tensor pad).
        pred2d = pred_flat[:n_main].reshape(rows, LANES)
        true2d = true_flat[:n_main].reshape(rows, LANES)

    # Byte-sized, dtype-aware tiles (~4 MiB per input per pipeline buffer).
    target_rows = max((MAX_TILE_BYTES // (itemsize * LANES)) // sub_mult * sub_mult,
                      sub_mult)
    rows_ceil = pl.cdiv(rows, sub_mult) * sub_mult
    tile_rows = min(target_rows, rows_ceil)
    num_steps = pl.cdiv(rows, tile_rows)
    if num_steps == 1 and rows >= 2 * sub_mult:
        # Prefer >= 2 steps so the "parallel" chunk axis can use both
        # TensorCores on v7x (costs one extra ~0.35 us step on v5e/v6e).
        tile_rows = pl.cdiv(pl.cdiv(rows, 2), sub_mult) * sub_mult
        num_steps = pl.cdiv(rows, tile_rows)

    chunks = NUM_CHUNKS if num_steps >= NUM_CHUNKS else 1
    steps_per_chunk = pl.cdiv(num_steps, chunks)
    has_dummy = chunks * steps_per_chunk > num_steps   # at most one dummy step
    ragged_last = (rows % tile_rows) != 0
    needs_edge_mask = has_dummy or ragged_last
    last_real = num_steps - 1

    if has_dummy:
        # Clamp so the dummy block re-reads an in-bounds tile; its
        # contribution is zeroed by the in-kernel edge mask.
        def in_map(c, s):
            return (jnp.minimum(c * steps_per_chunk + s, last_real), 0)
    else:
        def in_map(c, s):
            return (c * steps_per_chunk + s, 0)

    kernel = functools.partial(
        _dice_partial_kernel,
        steps_per_chunk=steps_per_chunk,
        tile_rows=tile_rows,
        rows=rows,
        num_steps_real=num_steps,
        needs_edge_mask=needs_edge_mask,
    )

    partial_sums = pl.pallas_call(
        kernel,
        out_shape=jax.ShapeDtypeStruct((chunks, 2, SUBLANES, LANES), jnp.float32),
        grid_spec=pltpu.PrefetchScalarGridSpec(
            num_scalar_prefetch=0,
            grid=(chunks, steps_per_chunk),
            in_specs=[
                pl.BlockSpec((tile_rows, LANES), in_map),
                pl.BlockSpec((tile_rows, LANES), in_map),
            ],
            out_specs=pl.BlockSpec((1, 2, SUBLANES, LANES),
                                   lambda c, s: (c, 0, 0, 0)),
        ),
        compiler_params=pltpu.CompilerParams(
            dimension_semantics=("parallel", "arbitrary"),
            vmem_limit_bytes=VMEM_LIMIT_BYTES,
        ),
    )(pred2d, true2d)

    # Tiny epilogue: one cross-lane reduce over a few KB + the dice formula.
    intersection = jnp.sum(partial_sums[:, 0])
    total = jnp.sum(partial_sums[:, 1])   # sum(sigmoid(pred)) + sum(true)
    if rem:
        tp = jax.nn.sigmoid(pred_flat[n_main:].astype(jnp.float32))
        tt = true_flat[n_main:].astype(jnp.float32)
        intersection = intersection + jnp.sum(tp * tt)
        total = total + jnp.sum(tp) + jnp.sum(tt)
    dice = (2.0 * intersection + smooth) / (total + smooth)
    return 1.0 - dice


if __name__ == "__main__":
    key = jax.random.PRNGKey(0)
    k1, k2 = jax.random.split(key)

    # NCHW, small shapes: batch=2, channels=4, spatial=16x16
    y_pred = jax.random.normal(k1, (2, 4, 16, 16), dtype=jnp.float32)
    y_true = (jax.random.uniform(k2, (2, 4, 16, 16)) > 0.5).astype(jnp.float32)

    loss = jax.jit(dice_loss)(y_pred, y_true)
    loss = jax.block_until_ready(loss)

    # Pure-JAX reference of the same forward semantics.
    p = jax.nn.sigmoid(y_pred)
    inter = jnp.sum(p * y_true)
    ref = 1.0 - (2.0 * inter + 1.0) / (jnp.sum(p) + jnp.sum(y_true) + 1.0)
    assert jnp.allclose(loss, ref, atol=1e-5, rtol=1e-5), (loss, ref)

    print("KERNEL_OK")
</pallas_src>

<mosaic_0001>
module attributes {stable_mosaic.version = 11 : i64} {
  func.func @_dice_partial_kernel(%arg0: i32, %arg1: i32, %arg2: memref<8x128xf32, #tpu.memory_space<vmem>>, %arg3: memref<8x128xf32, #tpu.memory_space<vmem>>, %arg4: memref<1x2x8x128xf32, #tpu.memory_space<vmem>>) attributes {dimension_semantics = [#tpu.dimension_semantics<parallel>, #tpu.dimension_semantics<arbitrary>], iteration_bounds = array<i64: 2, 1>, scalar_prefetch = 0 : i64, scratch_operands = 0 : i64, tpu.core_type = #tpu.core_type<tc>, window_params = [{transform_indices = @transform_0, window_bounds = array<i64: 8, 128>}, {transform_indices = @transform_1, window_bounds = array<i64: 8, 128>}, {transform_indices = @transform_2, window_bounds = array<i64: 1, 2, 8, 128>}]} {
    %c0_i32 = arith.constant 0 : i32
    %0 = arith.cmpi eq, %arg1, %c0_i32 : i32
    %1 = arith.extui %0 : i1 to i32
    %c0_i32_0 = arith.constant 0 : i32
    %2 = arith.cmpi ne, %1, %c0_i32_0 : i32
    scf.if %2 {
      %cst_21 = arith.constant 0.000000e+00 : f32
      %28 = vector.broadcast %cst_21 : f32 to vector<1x2x8x128xf32>
      %c0_22 = arith.constant 0 : index
      %c0_23 = arith.constant 0 : index
      %c0_24 = arith.constant 0 : index
      %c0_25 = arith.constant 0 : index
      %29 = vector.load %arg4[%c0_22, %c0_23, %c0_24, %c0_25] : memref<1x2x8x128xf32, #tpu.memory_space<vmem>>, vector<1x2x8x128xf32>
      tpu.vector_store %arg4[%c0_22, %c0_23, %c0_24, %c0_25], %28 {strides = array<i32>} : memref<1x2x8x128xf32, #tpu.memory_space<vmem>>, vector<1x2x8x128xf32>,
    } else {
    }
    %c0 = arith.constant 0 : index
    %c0_1 = arith.constant 0 : index
    %3 = vector.load %arg2[%c0, %c0_1] : memref<8x128xf32, #tpu.memory_space<vmem>>, vector<8x128xf32>
    %4 = arith.negf %3 : vector<8x128xf32>
    %5 = math.exp %4 : vector<8x128xf32>
    %cst = arith.constant 1.000000e+00 : f32
    %6 = vector.broadcast %cst : f32 to vector<8x128xf32>
    %7 = arith.addf %6, %5 : vector<8x128xf32>
    %8 = arith.divf %6, %7 : vector<8x128xf32>
    %c0_2 = arith.constant 0 : index
    %c0_3 = arith.constant 0 : index
    %9 = vector.load %arg3[%c0_2, %c0_3] : memref<8x128xf32, #tpu.memory_space<vmem>>, vector<8x128xf32>
    %c0_4 = arith.constant 0 : index
    %c0_5 = arith.constant 0 : index
    %c0_6 = arith.constant 0 : index
    %c0_7 = arith.constant 0 : index
    %10 = vector.load %arg4[%c0_4, %c0_5, %c0_6, %c0_7] : memref<1x2x8x128xf32, #tpu.memory_space<vmem>>, vector<1x1x8x128xf32>
    %11 = vector.shape_cast %10 : vector<1x1x8x128xf32> to vector<8x128xf32>
    %12 = arith.mulf %8, %9 : vector<8x128xf32>
    %13 = vector.shape_cast %12 : vector<8x128xf32> to vector<1x8x128xf32>
    %cst_8 = arith.constant dense<0.000000e+00> : vector<8x128xf32>
    %14 = vector.multi_reduction <add>, %13, %cst_8 [0] : vector<1x8x128xf32> to vector<8x128xf32>
    %15 = arith.addf %11, %14 : vector<8x128xf32>
    %c0_9 = arith.constant 0 : index
    %c0_10 = arith.constant 0 : index
    %c0_11 = arith.constant 0 : index
    %c0_12 = arith.constant 0 : index
    %16 = vector.load %arg4[%c0_9, %c0_10, %c0_11, %c0_12] : memref<1x2x8x128xf32, #tpu.memory_space<vmem>>, vector<1x1x8x128xf32>
    %17 = vector.shape_cast %16 : vector<1x1x8x128xf32> to vector<8x128xf32>
    %18 = vector.shape_cast %15 : vector<8x128xf32> to vector<1x1x8x128xf32>
    tpu.vector_store %arg4[%c0_9, %c0_10, %c0_11, %c0_12], %18 {strides = array<i32>} : memref<1x2x8x128xf32, #tpu.memory_space<vmem>>, vector<1x1x8x128xf32>,
    %c0_13 = arith.constant 0 : index
    %c1 = arith.constant 1 : index
    %c0_14 = arith.constant 0 : index
    %c0_15 = arith.constant 0 : index
    %19 = vector.load %arg4[%c0_13, %c1, %c0_14, %c0_15] : memref<1x2x8x128xf32, #tpu.memory_space<vmem>>, vector<1x1x8x128xf32>
    %20 = vector.shape_cast %19 : vector<1x1x8x128xf32> to vector<8x128xf32>
    %21 = arith.addf %8, %9 : vector<8x128xf32>
    %22 = vector.shape_cast %21 : vector<8x128xf32> to vector<1x8x128xf32>
    %cst_16 = arith.constant dense<0.000000e+00> : vector<8x128xf32>
    %23 = vector.multi_reduction <add>, %22, %cst_16 [0] : vector<1x8x128xf32> to vector<8x128xf32>
    %24 = arith.addf %20, %23 : vector<8x128xf32>
    %c0_17 = arith.constant 0 : index
    %c1_18 = arith.constant 1 : index
    %c0_19 = arith.constant 0 : index
    %c0_20 = arith.constant 0 : index
    %25 = vector.load %arg4[%c0_17, %c1_18, %c0_19, %c0_20] : memref<1x2x8x128xf32, #tpu.memory_space<vmem>>, vector<1x1x8x128xf32>
    %26 = vector.shape_cast %25 : vector<1x1x8x128xf32> to vector<8x128xf32>
    %27 = vector.shape_cast %24 : vector<8x128xf32> to vector<1x1x8x128xf32>
    tpu.vector_store %arg4[%c0_17, %c1_18, %c0_19, %c0_20], %27 {strides = array<i32>} : memref<1x2x8x128xf32, #tpu.memory_space<vmem>>, vector<1x1x8x128xf32>,
    return
  }
  func.func @transform_0(%arg0: i32, %arg1: i32) -> (i32, i32) {
    %c1_i32 = arith.constant 1 : i32
    %0 = arith.muli %arg0, %c1_i32 : i32
    %1 = arith.addi %0, %arg1 : i32
    %c0_i32 = arith.constant 0 : i32
    %c0_i32_0 = arith.constant 0 : i32
    return %1, %c0_i32 : i32, i32
  }
  func.func @transform_1(%arg0: i32, %arg1: i32) -> (i32, i32) {
    %c1_i32 = arith.constant 1 : i32
    %0 = arith.muli %arg0, %c1_i32 : i32
    %1 = arith.addi %0, %arg1 : i32
    %c0_i32 = arith.constant 0 : i32
    %c0_i32_0 = arith.constant 0 : i32
    return %1, %c0_i32 : i32, i32
  }
  func.func @transform_2(%arg0: i32, %arg1: i32) -> (i32, i32, i32, i32) {
    %c0_i32 = arith.constant 0 : i32
    %c0_i32_0 = arith.constant 0 : i32
    %c0_i32_1 = arith.constant 0 : i32
    %c0_i32_2 = arith.constant 0 : i32
    return %arg0, %c0_i32, %c0_i32_0, %c0_i32_1 : i32, i32, i32, i32
  }
}

</mosaic_0001>

<llo_original>
// kernel: dice_loss.1
$region0: #{dice_loss.1}
  #allocation0 [shape = 'u32[]', space=smem, size = 0x4, offset = 0x4, fixed_abs, tag = 'smem constant byte address 0x4 - core index']
  #allocation1 [shape = 'u32[72,128]{1,0:T(1,128)}', space=vmem, size = 0x9000, scoped, tag = 'internal scratch']
  %s0 = inlined_call_operand.vmem [shape: f32[16,128], index: 0, kind: input, shape index: {}]
  %s1 = inlined_call_operand.vmem [shape: f32[16,128], index: 1, kind: input, shape index: {}]
  %s2 = inlined_call_operand.vmem [shape: f32[2,2,8,128], index: 2, kind: output, shape index: {}]
  %s3 = sld [smem:[#allocation0]]
  $region45: #{dice_loss.1} parent=0
    _
  %s5 = ssub.s32 1, %s3
  %s6 = scalar_select 0, %s5, %s3
  loop: start=0, step=1, limit=4
  $region2: #{dice_loss.1} parent=0 // loop_pre_header
    _
  $region3: #{dice_loss.1} parent=0 // loop_header
    %s8 = sphi 0, %s12
    %p9 = scmp.ge.s32.totalorder %s8, 4
    %s15 = sphi 0, %s27
    %s16 = sphi 0, %s23
    %s17 = sphi 0, %s15
    %s18 = sphi 0, %s16
    %s19 = sphi 0, %s17
    %s20 = sphi 0, %s18
    %s32 = sphi 0, %s34
    %s35 = sphi 0, %s32
    %s36 = sphi 0, %s35
    %s52 = sphi 0, %s36
    %s60 = sphi 0, %s62
    %s63 = sphi 0, %s60
    %s64 = sphi 0, %s63
    %s80 = sphi 0, %s64
    %s86 = sphi 0, %s88
    %s89 = sphi 0, %s86
    %s90 = sphi 0, %s89
    %s106 = sphi 0, %s90
  $region4: #{dice_loss.1} parent=0 // loop_header_branch
    %11 = sbr.rel (%p9) target = $region8
  $region5: #{dice_loss.1} parent=0 // loop_body
    %s13 = ssub.s32 %s8, 1
    %s14 = ssub.s32 %s8, 2
    %s21 = sadd.s32 1, %s16
    %p22 = scmp.ge.s32.totalorder %s21, 1
    %s23 = scalar_select %p22, 0, %s21
    %s24 = sadd.s32 1, %s15
    %s25 = scalar_select %p22, %s24, %s15
    %p26 = scmp.ge.s32.totalorder %s25, 2
    %s27 = scalar_select %p26, 0, %s25
    %s28 = sadd.s32 %s15, %s16
    %s29 = sadd.s32 %s27, %s23
    %s30 = ssub.s32 %s28, %s29
    %p31 = scmp.eq.s32.totalorder %s30, 0
    %s33 = sadd.s32 %s32, 1
    %s34 = scalar_select %p31, %s32, %s33
    %p37 = pneg %p31
    %p38 = scmp.eq.s32.totalorder %s8, 1
    %p39 = por %p37, %p38
    %p40 = scmp.ne.s32.totalorder %s32, %s35
    %p41 = scmp.eq.s32.totalorder %s8, 0
    %p42 = por %p40, %p41
    %p43 = scmp.ne.s32.totalorder %s32, %s35
    %p44 = scmp.eq.s32.totalorder %s13, 1
    %p45 = por %p43, %p44
    %p46 = scmp.ne.s32.totalorder %s35, %s36
    %p47 = scmp.eq.s32.totalorder %s13, 0
    %p48 = por %p46, %p47
    %p49 = scmp.ne.s32.totalorder %s35, %s36
    %p50 = scmp.eq.s32.totalorder %s14, 1
    %p51 = por %p49, %p50
    %p53 = scmp.ne.s32.totalorder %s36, %s52
    %p54 = scmp.eq.s32.totalorder %s14, 0
    %p55 = por %p53, %p54
    %s56 = sadd.s32 %s15, %s16
    %s57 = sadd.s32 %s27, %s23
    %s58 = ssub.s32 %s56, %s57
    %p59 = scmp.eq.s32.totalorder %s58, 0
    %s61 = sadd.s32 %s60, 1
    %s62 = scalar_select %p59, %s60, %s61
    %p65 = pneg %p59
    %p66 = scmp.eq.s32.totalorder %s8, 1
    %p67 = por %p65, %p66
    %p68 = scmp.ne.s32.totalorder %s60, %s63
    %p69 = scmp.eq.s32.totalorder %s8, 0
    %p70 = por %p68, %p69
    %p71 = scmp.ne.s32.totalorder %s60, %s63
    %p72 = scmp.eq.s32.totalorder %s13, 1
    %p73 = por %p71, %p72
    %p74 = scmp.ne.s32.totalorder %s63, %s64
    %p75 = scmp.eq.s32.totalorder %s13, 0
    %p76 = por %p74, %p75
    %p77 = scmp.ne.s32.totalorder %s63, %s64
    %p78 = scmp.eq.s32.totalorder %s14, 1
    %p79 = por %p77, %p78
    %p81 = scmp.ne.s32.totalorder %s64, %s80
    %p82 = scmp.eq.s32.totalorder %s14, 0
    %p83 = por %p81, %p82
    %s84 = ssub.s32 %s15, %s27
    %p85 = scmp.eq.s32.totalorder %s84, 0
    %s87 = sadd.s32 %s86, 1
    %s88 = scalar_select %p85, %s86, %s87
    %p91 = pneg %p85
    %p92 = scmp.eq.s32.totalorder %s8, 1
    %p93 = por %p91, %p92
    %p94 = scmp.ne.s32.totalorder %s86, %s89
    %p95 = scmp.eq.s32.totalorder %s8, 0
    %p96 = por %p94, %p95
    %p97 = scmp.ne.s32.totalorder %s86, %s89
    %p98 = scmp.eq.s32.totalorder %s13, 1
    %p99 = por %p97, %p98
    %p100 = scmp.ne.s32.totalorder %s89, %s90
    %p101 = scmp.eq.s32.totalorder %s13, 0
    %p102 = por %p100, %p101
    %p103 = scmp.ne.s32.totalorder %s89, %s90
    %p104 = scmp.eq.s32.totalorder %s14, 1
    %p105 = por %p103, %p104
    %p107 = scmp.ne.s32.totalorder %s90, %s106
    %p108 = scmp.eq.s32.totalorder %s14, 0
    %p109 = por %p107, %p108
    %p110 = scmp.le.s32.totalorder 1, %s8
    %p111 = scmp.lt.s32.totalorder %s8, 3
    %p112 = pnand %p110, %p111
    %p113 = pneg %p112
    // Predicated region
    $region9: #{dice_loss.1} parent=5 // pred_check
      _
    $region10: #{dice_loss.1} parent=5 // pred_check_branch
      %115 = sbr.rel (%p112) target = $region12
    $region11: #{dice_loss.1} parent=5 // pred_region
      %s116 = ssub.s32 %s8, 1
    $region12: #{dice_loss.1} parent=5 // pred_fallthru
      _
    %p117 = scmp.lt.s32.totalorder %s8, 2
    // Predicated region
    $region13: #{dice_loss.1} parent=5 // pred_check
      %p118 = pneg %p117
    $region14: #{dice_loss.1} parent=5 // pred_check_branch
      %120 = sbr.rel (%p118) target = $region16
    $region15: #{dice_loss.1} parent=5 // pred_region
      // Predicated region
      $region17: #{dice_loss.1} parent=15 // pred_check
        %p121 = pneg %p42
      $region18: #{dice_loss.1} parent=15 // pred_check_branch
        %123 = sbr.rel (%p121) target = $region20
      $region19: #{dice_loss.1} parent=15 // pred_region
        %s124 = sadd.s32 %s15, %s16
        %p125 = scmp.lt.s32.totalorder %s124, 1
        %s126 = scalar_select %p125, %s124, 1
        %s127 = smul.addr %s126, 8
        %s128 = scalar_lea.vmem %s0, %s127
        %s129 = sadd.s32 %s15, %s16
      $region20: #{dice_loss.1} parent=15 // pred_fallthru
        _
      // Predicated region
      $region21: #{dice_loss.1} parent=15 // pred_check
        %p130 = pneg %p70
      $region22: #{dice_loss.1} parent=15 // pred_check_branch
        %132 = sbr.rel (%p130) target = $region24
      $region23: #{dice_loss.1} parent=15 // pred_region
        %s133 = sadd.s32 %s15, %s16
        %p134 = scmp.lt.s32.totalorder %s133, 1
        %s135 = scalar_select %p134, %s133, 1
        %s136 = smul.addr %s135, 8
        %s137 = scalar_lea.vmem %s1, %s136
        %s138 = sadd.s32 %s15, %s16
      $region24: #{dice_loss.1} parent=15 // pred_fallthru
        _
    $region16: #{dice_loss.1} parent=5 // pred_fallthru
      _
    %p139 = scmp.le.s32.totalorder 1, %s8
    %p140 = scmp.lt.s32.totalorder %s8, 3
    %p141 = pnand %p139, %p140
    %p142 = pneg %p141
    // Predicated region
    $region25: #{dice_loss.1} parent=5 // pred_check
      _
    $region26: #{dice_loss.1} parent=5 // pred_check_branch
      %144 = sbr.rel (%p141) target = $region28
    $region27: #{dice_loss.1} parent=5 // pred_region
      %s145 = ssub.s32 %s8, 1
      %s146 = sadd.s32 %s17, %s18
      %p147 = scmp.lt.s32.totalorder %s146, 1
      %s148 = scalar_select %p147, %s146, 1
      %s149 = smul.addr %s148, 8
      %s150 = scalar_lea.vmem %s0, %s149
      %p151 = pneg %p48
      %p152 = pneg %p45
      %s153 = sadd.s32 %s17, %s18
      %p154 = scmp.lt.s32.totalorder %s153, 1
      %s155 = scalar_select %p154, %s153, 1
      %s156 = smul.addr %s155, 8
      %s157 = scalar_lea.vmem %s1, %s156
      %p158 = pneg %p76
      %p159 = pneg %p73
      %p160 = pneg %p102
      %p161 = pneg %p99
      %p162 = scmp.lt.s32.totalorder %s17, 1
      %s163 = scalar_select %p162, %s17, 1
      %s164 = smul.addr %s163, 2
      %s165 = smul.addr %s164, 8
      %s166 = scalar_lea.vmem %s2, %s165
      %s167 = sadd.s32 %s17, %s18
      %p168 = scmp.lt.s32.totalorder %s167, 1
      %s169 = scalar_select %p168, %s167, 1
      %s170 = smul.addr %s169, 8
      %s171 = scalar_lea.vmem %s0, %s170
      %s172 = sadd.s32 %s17, %s18
      %s173 = sadd.s32 %s17, %s18
      %p174 = scmp.lt.s32.totalorder %s173, 1
      %s175 = scalar_select %p174, %s173, 1
      %s176 = smul.addr %s175, 8
      %s177 = scalar_lea.vmem %s1, %s176
      %s178 = sadd.s32 %s17, %s18
      %p179 = scmp.lt.s32.totalorder %s17, 1
      %s180 = scalar_select %p179, %s17, 1
      %s181 = smul.addr %s180, 2
      %s182 = smul.addr %s181, 8
      %s183 = scalar_lea.vmem %s2, %s182
      %p184 = scmp.eq.s32.totalorder %s18, 0
      // Predicated region
      $region29: #{dice_loss.1} parent=27 // pred_check
        %p185 = pneg %p184
      $region30: #{dice_loss.1} parent=27 // pred_check_branch
        %187 = sbr.rel (%p185) target = $region32
      $region31: #{dice_loss.1} parent=27 // pred_region
        %188 = vst [vmem:[%s183] sm:$0xff] 0.0
        %189 = vst [vmem:[%s183 + $0x8] sm:$0xff] 0.0
      $region32: #{dice_loss.1} parent=27 // pred_fallthru
        _
      %v190 = vld [vmem:[%s171] sm:$0xff]
      %v191 = vxor.u32 %v190, 2147483648
      %v192 = vmul.f32 %v191, 1.442695
      %v193 = vpow.pop %v192
      %v194 = vadd.f32 %v193, 1.0
      %v195 = vrcp.pop %v194
      %v196 = vmul.f32 %v194, %v195
      %v197 = vsub.f32 1.0, %v196
      %v198 = vmul.f32 %v195, %v197
      %v199 = vadd.f32 %v195, %v198
      %vm200 = vweird.f32 %v194
      %vm201 = vweird.f32 %v195
      %vm202 = vmor %vm200, %vm201
      %v203 = vsel %vm202, %v195, %v199
      %v204 = vand.u32 2147483647, %v194
      %vm205 = vcmp.eq.f32.partialorder %v204, 8.507059e+37
      %v206 = vand.u32 %v194, 2147483648
      %v207 = vor.u32 1.1754944e-38, %v206
      %v208 = vsel %vm205, %v207, %v203
      %v209 = vmul.f32 1.0, %v208
      %v210 = vld [vmem:[%s177] sm:$0xff]
      %v211 = vld [vmem:[%s183] sm:$0xff]
      %v212 = vmul.f32 %v209, %v210
      %v213 = vadd.f32 %v212, 0.0
      %v214 = vadd.f32 %v211, %v213
      %215 = vst [vmem:[%s183] sm:$0xff] %v214
      %s216 = scalar_lea.vmem %s183, 8
      %v217 = vld [vmem:[%s216] sm:$0xff]
      %v218 = vadd.f32 %v209, %v210
      %v219 = vadd.f32 %v218, 0.0
      %v220 = vadd.f32 %v217, %v219
      %221 = vst [vmem:[%s216] sm:$0xff] %v220
      %p222 = scmp.lt.s32.totalorder %s17, 1
      %s223 = scalar_select %p222, %s17, 1
      %s224 = smul.addr %s223, 2
      %s225 = smul.addr %s224, 8
      %s226 = scalar_lea.vmem %s2, %s225
      // Predicated region
      $region33: #{dice_loss.1} parent=27 // pred_check
        %p227 = pneg %p99
      $region34: #{dice_loss.1} parent=27 // pred_check_branch
        %229 = sbr.rel (%p227) target = $region36
      $region35: #{dice_loss.1} parent=27 // pred_region
        _
      $region36: #{dice_loss.1} parent=27 // pred_fallthru
        _
    $region28: #{dice_loss.1} parent=5 // pred_fallthru
      _
    %p230 = scmp.le.s32.totalorder 2, %s8
    // Predicated region
    $region37: #{dice_loss.1} parent=5 // pred_check
      %p231 = pneg %p230
    $region38: #{dice_loss.1} parent=5 // pred_check_branch
      %233 = sbr.rel (%p231) target = $region40
    $region39: #{dice_loss.1} parent=5 // pred_region
      %s234 = ssub.s32 %s8, 2
      // Predicated region
      $region41: #{dice_loss.1} parent=39 // pred_check
        %p235 = pneg %p105
      $region42: #{dice_loss.1} parent=39 // pred_check_branch
        %237 = sbr.rel (%p235) target = $region44
      $region43: #{dice_loss.1} parent=39 // pred_region
        %p238 = scmp.lt.s32.totalorder %s19, 1
        %s239 = scalar_select %p238, %s19, 1
        %s240 = smul.addr %s239, 2
        %s241 = smul.addr %s240, 8
        %s242 = scalar_lea.vmem %s2, %s241
      $region44: #{dice_loss.1} parent=39 // pred_fallthru
        _
    $region40: #{dice_loss.1} parent=5 // pred_fallthru
      _
  $region6: #{dice_loss.1} parent=0 // loop_footer
    %s12 = sadd.s32 1, %s8
  $region7: #{dice_loss.1} parent=0 // loop_footer_branch
    %7 = sbr.rel target = $region3
  $region8: #{dice_loss.1} parent=0 // loop_exit
    _

</llo_original>
